<compile_context>
chip_gen: v7x
topology: tpu7x:2x2x1
jax: 0.10.0
libtpu: 0.0.40
codegen_flags: <defaults>
</compile_context>

<pallas_src>
import jax
import jax.numpy as jnp
from jax.experimental import pallas as pl
from jax.experimental.pallas import tpu as pltpu

EPSILON = 1e-6
SIGMA_BOOST = 2.0
TAU = 0.1

_LANE = 128
_SUBLANE = 8


def _round_up(n, m):
    return ((n + m - 1) // m) * m


# --------------------------------------------------------------------------
# Pallas kernel: batch-tiled sparse matmul
#   out[b, c_p] += v'_p * x[b, r_p]   for every sampled point p
# as two MXU matmuls against one-hot gather/scatter matrices.  p_t / q / v'
# have a constant block index across the batch-tile grid, so they are DMAed
# into VMEM once and reused for every tile.
# --------------------------------------------------------------------------
def _sparse_mm_kernel(x_ref, pt_ref, q_ref, v_ref, o_ref):
    # x_ref : (TB, IN)     compute dtype (f32 or bf16)
    # pt_ref: (IN, Pp)     one-hot gather matrix, exact 0/1
    # q_ref : (Pp, OUTp)   one-hot scatter matrix (duplicate cols accumulate)
    # v_ref : (1, Pp)      f32 mixture values, 0 on padded points
    # o_ref : (TB, OUTp)   f32
    gathered = jnp.dot(x_ref[...], pt_ref[...],
                       preferred_element_type=jnp.float32)        # (TB, Pp)
    weighted = (gathered * v_ref[...]).astype(x_ref.dtype)        # (TB, Pp)
    o_ref[...] = jnp.dot(weighted, q_ref[...],
                         preferred_element_type=jnp.float32)      # (TB, OUTp)


def sparse_mm(x, r_idx, c_idx, v_prime, output_size, *, max_batch_tile=256):
    b, in_size = x.shape
    p = int(r_idx.shape[0])

    # Keep x's dtype (bf16 stays bf16: full-rate MXU; f32 stays f32).
    cd = x.dtype if x.dtype in (jnp.bfloat16, jnp.float32) else jnp.float32
    x = x.astype(cd)

    # Lane-dense padding of points and output columns.
    p_pad = _round_up(max(p, _LANE), _LANE)
    out_pad = _round_up(max(output_size, _LANE), _LANE)

    r = jnp.zeros((p_pad,), jnp.int32).at[:p].set(r_idx.astype(jnp.int32))
    c = jnp.zeros((p_pad,), jnp.int32).at[:p].set(c_idx.astype(jnp.int32))
    v = jnp.zeros((1, p_pad), jnp.float32).at[0, :p].set(
        v_prime.astype(jnp.float32))

    # One-hot gather / scatter matrices, built ONCE per call (hoisted out of
    # the per-batch-tile loop).  Values are exact 0/1 in either dtype.
    p_t = (jax.lax.broadcasted_iota(jnp.int32, (in_size, p_pad), 0)
           == r[None, :]).astype(cd)                               # (IN, Pp)
    q = (jax.lax.broadcasted_iota(jnp.int32, (p_pad, out_pad), 1)
         == c[:, None]).astype(cd)                                 # (Pp, OUTp)

    # Batch tile: multiple of 8 sublanes, shrink if the VMEM estimate is big.
    itemsize = jnp.dtype(cd).itemsize
    tb = _round_up(min(max_batch_tile, _round_up(b, _SUBLANE)), _SUBLANE)

    def vmem_estimate(tile_b):
        est = 2 * tile_b * in_size * itemsize       # x (double buffered)
        est += 2 * in_size * p_pad * itemsize       # p_t
        est += 2 * p_pad * out_pad * itemsize       # q
        est += 2 * p_pad * 4                        # v'
        est += 2 * tile_b * out_pad * 4             # out
        est += 2 * tile_b * p_pad * 4               # gathered / weighted temps
        return est

    budget = 48 * 1024 * 1024                       # conservative for v7x 64 MiB
    while vmem_estimate(tb) > budget and tb > _SUBLANE:
        tb = max(_SUBLANE, (tb // 2 // _SUBLANE) * _SUBLANE)

    b_pad = _round_up(b, tb)
    if b_pad != b:
        x = jnp.zeros((b_pad, in_size), cd).at[:b].set(x)

    vmem_limit = int(min(max(vmem_estimate(tb) * 2, 32 * 1024 * 1024),
                         64 * 1024 * 1024))

    out = pl.pallas_call(
        _sparse_mm_kernel,
        out_shape=jax.ShapeDtypeStruct((b_pad, out_pad), jnp.float32),
        grid=(b_pad // tb,),
        in_specs=[
            pl.BlockSpec((tb, in_size), lambda i: (i, 0)),      # x tile
            pl.BlockSpec((in_size, p_pad), lambda i: (0, 0)),   # p_t (constant)
            pl.BlockSpec((p_pad, out_pad), lambda i: (0, 0)),   # q   (constant)
            pl.BlockSpec((1, p_pad), lambda i: (0, 0)),         # v'  (constant)
        ],
        out_specs=pl.BlockSpec((tb, out_pad), lambda i: (i, 0)),
        compiler_params=pltpu.CompilerParams(
            dimension_semantics=("parallel",),
            vmem_limit_bytes=vmem_limit),
    )(x, p_t, q, v)
    return out[:b, :output_size]


# --------------------------------------------------------------------------
# Mixture weights v' (plain JAX: O(P*G) elementwise, fused by XLA with the
# point sampling; a dedicated pallas_call here is pure overhead).
# --------------------------------------------------------------------------
def _mixture_v_prime(d_prime, D, sigma, keep, values):
    std = jnp.sqrt(sigma)                                       # (G, 2)
    z = (d_prime[:, :, None] - D.T[None, :, :]) / std.T[None, :, :]   # (P, 2, G)
    logp = -0.5 * z * z - 0.5 * jnp.log(2.0 * jnp.pi) - jnp.log(std).T[None, :, :]
    probs = jnp.exp(logp.sum(axis=1)) * keep[:, None]           # (P, G)
    # NOTE: like the original module, denom can underflow if every sampled
    # point is far from a gaussian; kept as-is to preserve reference semantics.
    pi = probs / probs.sum(axis=0, keepdims=True)
    return (pi * values[None, :]).sum(axis=1)                   # (P,)


# --------------------------------------------------------------------------
# SparseLayer (forward-pass port)
# --------------------------------------------------------------------------
class SparseLayerPallas:
    def __init__(self, input_size, output_size, n_gaussians, n_local, n_global,
                 fix_values=False, local1=None, local2=None, *, key):
        self.input_size = input_size
        self.output_size = output_size
        self.n_gauss = n_gaussians
        self.n_local = n_local
        self.n_global = n_global
        self.tau = TAU
        if local1 is None:
            local1 = local2 = 4.0
        self.local_shape = jnp.array([local1, local2], jnp.float32)
        self.shape_vec = jnp.array([input_size, output_size], jnp.float32)

        k1, k2, k3 = jax.random.split(key, 3)
        self.D_param = jax.random.normal(k1, (n_gaussians, 2), jnp.float32)
        self.sigma_param = jax.random.normal(k2, (n_gaussians,), jnp.float32)
        if fix_values:
            self.v_param = jnp.ones((n_gaussians,), jnp.float32)
        else:
            self.v_param = jax.random.normal(k3, (n_gaussians,), jnp.float32)

    # ---- hypernetwork -----------------------------------------------------
    def hyper(self):
        D = jax.nn.sigmoid(self.D_param) * (self.shape_vec - 1.0)
        sigma = (jax.nn.softplus(self.sigma_param + SIGMA_BOOST) + EPSILON)[:, None]
        sigma = jnp.tile(sigma, (1, 2)) * self.shape_vec * 0.1 + self.tau
        return D, sigma, self.v_param

    # ---- point sampling + dedup mask (shared by kernel path and reference) -
    # TODO(synk): the cantor argsort dedup mask stays in plain JAX (no Pallas
    # sort primitive on TPU).
    def _points(self, key):
        D, sigma, values = self.hyper()
        k1, k2 = jax.random.split(key)
        ng, nl, ngl = self.n_gauss, self.n_local, self.n_global

        select_nearest = jnp.tile(
            jnp.array([[0., 0.], [0., 1.], [1., 0.], [1., 1.]], jnp.float32), (ng, 1))
        nearest = jnp.repeat(D, 4, axis=0) + select_nearest
        select_local = (jax.random.uniform(k1, (nl * ng, 2), jnp.float32) - 0.5) * self.local_shape
        local = jnp.repeat(D, nl, axis=0) + select_local
        glob = jax.random.uniform(k2, (ngl * ng, 2), jnp.float32) * self.shape_vec

        d_prime = jnp.concatenate([nearest, local, glob], axis=0)
        d_prime = jnp.round(d_prime)
        d_prime = jnp.stack(
            [jnp.clip(d_prime[:, 0], 0.0, self.shape_vec[0] - 1.0),
             jnp.clip(d_prime[:, 1], 0.0, self.shape_vec[1] - 1.0)], axis=1)

        # cantor-pairing duplicate mask, exact int32 arithmetic (reproduces the
        # reference's gather indexing).
        ri = d_prime[:, 0].astype(jnp.int32)
        ci = d_prime[:, 1].astype(jnp.int32)
        s = ri + ci
        cantor = (s * (s + 1)) // 2 + ci
        order = jnp.argsort(cantor)
        cs = cantor[order]
        dup = jnp.concatenate(
            [jnp.zeros((1,), jnp.int32), (cs[1:] == cs[:-1]).astype(jnp.int32)])
        mask = dup[order]
        keep = (1 - mask).astype(jnp.float32)
        return D, sigma, values, d_prime, keep

    # ---- forward ------------------------------------------------------------
    def _sample_weight(self, key):
        D, sigma, values, d_prime, keep = self._points(key)
        v_prime = _mixture_v_prime(d_prime, D, sigma, keep, values)
        return d_prime.astype(jnp.int32), v_prime

    def __call__(self, x, key):
        indices, v_prime = self._sample_weight(key)
        return sparse_mm(x, indices[:, 0], indices[:, 1], v_prime,
                         self.output_size)                          # Pallas kernel


# --------------------------------------------------------------------------
# Pure-JAX reference (same point sampling / v') for a correctness check of the
# Pallas sparse_mm kernel: dense scatter-add weight + x @ W.
# --------------------------------------------------------------------------
def reference_forward(layer, x, key):
    D, sigma, values, d_prime, keep = layer._points(key)
    v_prime = _mixture_v_prime(d_prime, D, sigma, keep, values)
    r = d_prime[:, 0].astype(jnp.int32)
    c = d_prime[:, 1].astype(jnp.int32)
    w = jnp.zeros((layer.input_size, layer.output_size), jnp.float32).at[r, c].add(v_prime)
    return x.astype(jnp.float32) @ w


if __name__ == "__main__":
    key = jax.random.PRNGKey(0)
    pkey, xkey, skey = jax.random.split(key, 3)

    input_size, output_size = 32, 16
    n_gauss, n_local, n_global = 4, 2, 2     # -> P = 4 * (4 + 2 + 2) = 32 points
    batch = 2

    layer = SparseLayerPallas(input_size, output_size, n_gauss, n_local, n_global,
                              key=pkey)
    x = jax.random.normal(xkey, (batch, input_size), jnp.float32)

    out = layer(x, skey)
    out = jax.block_until_ready(out)

    out_ref = reference_forward(layer, x, skey)
    assert out.shape == (batch, output_size), out.shape
    assert jnp.allclose(out, out_ref, rtol=1e-4, atol=1e-4), (out, out_ref)

    print("KERNEL_OK")
</pallas_src>

<mosaic_0001>
module attributes {stable_mosaic.version = 11 : i64} {
  func.func @_sparse_mm_kernel(%arg0: i32, %arg1: memref<8x32xf32, #tpu.memory_space<vmem>>, %arg2: memref<32x128xf32, #tpu.memory_space<vmem>>, %arg3: memref<128x128xf32, #tpu.memory_space<vmem>>, %arg4: memref<1x128xf32, #tpu.memory_space<vmem>>, %arg5: memref<8x128xf32, #tpu.memory_space<vmem>>) attributes {dimension_semantics = [#tpu.dimension_semantics<parallel>], iteration_bounds = array<i64: 1>, scalar_prefetch = 0 : i64, scratch_operands = 0 : i64, tpu.core_type = #tpu.core_type<tc>, window_params = [{transform_indices = @transform_0, window_bounds = array<i64: 8, 32>}, {pipeline_mode = #tpu.pipeline_mode<synchronous>, transform_indices = @transform_1, window_bounds = array<i64: 32, 128>}, {pipeline_mode = #tpu.pipeline_mode<synchronous>, transform_indices = @transform_2, window_bounds = array<i64: 128, 128>}, {pipeline_mode = #tpu.pipeline_mode<synchronous>, transform_indices = @transform_3, window_bounds = array<i64: 1, 128>}, {transform_indices = @transform_4, window_bounds = array<i64: 8, 128>}]} {
    %c0 = arith.constant 0 : index
    %c0_0 = arith.constant 0 : index
    %0 = vector.load %arg1[%c0, %c0_0] : memref<8x32xf32, #tpu.memory_space<vmem>>, vector<8x32xf32>
    %c0_1 = arith.constant 0 : index
    %c0_2 = arith.constant 0 : index
    %1 = vector.load %arg2[%c0_1, %c0_2] : memref<32x128xf32, #tpu.memory_space<vmem>>, vector<32x128xf32>
    %cst = arith.constant dense<0.000000e+00> : vector<8x128xf32>
    %2 = tpu.matmul %0, %1, %cst {dimension_numbers = #tpu.dot_dimension_numbers<[1], [0], [0], [1], [0, 0, 1, 1], [], []>} : vector<8x32xf32>, vector<32x128xf32>, vector<8x128xf32> -> vector<8x128xf32>
    %c0_3 = arith.constant 0 : index
    %c0_4 = arith.constant 0 : index
    %3 = vector.load %arg4[%c0_3, %c0_4] : memref<1x128xf32, #tpu.memory_space<vmem>>, vector<1x128xf32>
    %4 = vector.broadcast %3 : vector<1x128xf32> to vector<8x128xf32>
    %5 = arith.mulf %2, %4 : vector<8x128xf32>
    %c0_5 = arith.constant 0 : index
    %c0_6 = arith.constant 0 : index
    %6 = vector.load %arg3[%c0_5, %c0_6] : memref<128x128xf32, #tpu.memory_space<vmem>>, vector<128x128xf32>
    %cst_7 = arith.constant dense<0.000000e+00> : vector<8x128xf32>
    %7 = tpu.matmul %5, %6, %cst_7 {dimension_numbers = #tpu.dot_dimension_numbers<[1], [0], [0], [1], [0, 0, 1, 1], [], []>} : vector<8x128xf32>, vector<128x128xf32>, vector<8x128xf32> -> vector<8x128xf32>
    %c0_8 = arith.constant 0 : index
    %c0_9 = arith.constant 0 : index
    %8 = vector.load %arg5[%c0_8, %c0_9] : memref<8x128xf32, #tpu.memory_space<vmem>>, vector<8x128xf32>
    tpu.vector_store %arg5[%c0_8, %c0_9], %7 {strides = array<i32>} : memref<8x128xf32, #tpu.memory_space<vmem>>, vector<8x128xf32>,
    return
  }
  func.func @transform_0(%arg0: i32) -> (i32, i32) {
    %c0_i32 = arith.constant 0 : i32
    %c0_i32_0 = arith.constant 0 : i32
    return %arg0, %c0_i32 : i32, i32
  }
  func.func @transform_1(%arg0: i32) -> (i32, i32) {
    %c0_i32 = arith.constant 0 : i32
    %c0_i32_0 = arith.constant 0 : i32
    %c0_i32_1 = arith.constant 0 : i32
    return %c0_i32, %c0_i32_0 : i32, i32
  }
  func.func @transform_2(%arg0: i32) -> (i32, i32) {
    %c0_i32 = arith.constant 0 : i32
    %c0_i32_0 = arith.constant 0 : i32
    %c0_i32_1 = arith.constant 0 : i32
    return %c0_i32, %c0_i32_0 : i32, i32
  }
  func.func @transform_3(%arg0: i32) -> (i32, i32) {
    %c0_i32 = arith.constant 0 : i32
    %c0_i32_0 = arith.constant 0 : i32
    %c0_i32_1 = arith.constant 0 : i32
    return %c0_i32, %c0_i32_0 : i32, i32
  }
  func.func @transform_4(%arg0: i32) -> (i32, i32) {
    %c0_i32 = arith.constant 0 : i32
    %c0_i32_0 = arith.constant 0 : i32
    return %arg0, %c0_i32 : i32, i32
  }
}

</mosaic_0001>

<llo_original>
// kernel: tpu_custom_call.1
$region0: #{tpu_custom_call.1}
  #allocation0 [shape = 'u32[]', space=smem, size = 0x4, offset = 0x4, fixed_abs, tag = 'smem constant byte address 0x4 - core index']
  #allocation1 [shape = 'u32[144,128]{1,0:T(1,128)}', space=vmem, size = 0x12000, scoped, tag = 'internal scratch']
  %s0 = inlined_call_operand.hbm [shape: f32[8,32], index: 0, kind: input, shape index: {}]
  %s1 = inlined_call_operand.hbm [shape: f32[32,128], index: 1, kind: input, shape index: {}]
  %s2 = inlined_call_operand.hbm [shape: f32[128,128], index: 2, kind: input, shape index: {}]
  %s3 = inlined_call_operand.vmem [shape: f32[1,128], index: 3, kind: input, shape index: {}]
  %s4 = inlined_call_operand.hbm [shape: f32[8,128], index: 4, kind: output, shape index: {}]
  %s5 = sld [smem:[#allocation0]]
  $region38: #{tpu_custom_call.1} parent=0
    _
  %s7 = ssub.s32 1, %s5
  %s8 = scalar_select 0, %s7, %s5
  $region1: #{tpu_custom_call.1} parent=0
    #allocation2 [shape = 'u8[4096]{0}', space=vmem, size = 0x1000, scoped, tag = 'input window, operand 0, single buffered']
    #allocation3 [shape = 's32[1]{0}', space=sflag, size = 0x4, scoped, tag = 'scoped memory for tpu_custom_call.1']
    #allocation4 [shape = 's32[1]{0}', space=sflag, size = 0x4, scoped, tag = 'scoped memory for tpu_custom_call.1']
    #allocation5 [shape = 'u8[16384]{0}', space=vmem, size = 0x4000, scoped, tag = 'input window, operand 1, single buffered']
    #allocation6 [shape = 's32[1]{0}', space=sflag, size = 0x4, scoped, tag = 'scoped memory for tpu_custom_call.1']
    #allocation7 [shape = 'u8[65536]{0}', space=vmem, size = 0x10000, scoped, tag = 'input window, operand 2, single buffered']
    #allocation8 [shape = 'u8[4096]{0}', space=vmem, size = 0x1000, scoped, tag = 'output window, operand 0, single buffered']
    %9 = vsyncpa [#allocation3], 0
    %10 = vsyncpa [#allocation6], 0
    %11 = vsyncpa [#allocation4], 0
    // Predicated region
    $region2: #{tpu_custom_call.1} parent=1 // pred_check
      _
    $region3: #{tpu_custom_call.1} parent=1 // pred_check_branch
      %13 = sbr.rel (0) target = $region5
    $region4: #{tpu_custom_call.1} parent=1 // pred_region
      %s15 = ssub.s32 128, 128
      %16 = vsyncadd [#allocation3], %s15
      %s18 = sshll.u32 [#allocation2], 4
      %s19 = int_to_ptr.vmem [resolvable:$true] %s18
      %21 = dma.hbm_to_vmem [thread:$0]  %s0, 128, %s19, [#allocation3]
    $region5: #{tpu_custom_call.1} parent=1 // pred_fallthru
      _
    // Predicated region
    $region6: #{tpu_custom_call.1} parent=1 // pred_check
      _
    $region7: #{tpu_custom_call.1} parent=1 // pred_check_branch
      %23 = sbr.rel (0) target = $region9
    $region8: #{tpu_custom_call.1} parent=1 // pred_region
      %s25 = ssub.s32 512, 512
      %26 = vsyncadd [#allocation6], %s25
      %s27 = sshll.u32 [#allocation5], 4
      %s28 = int_to_ptr.vmem [resolvable:$true] %s27
      %33 = dma.hbm_to_vmem [thread:$0]  %s1, 512, %s28, [#allocation6], 128, 128, 8
    $region9: #{tpu_custom_call.1} parent=1 // pred_fallthru
      _
    // Predicated region
    $region10: #{tpu_custom_call.1} parent=1 // pred_check
      _
    $region11: #{tpu_custom_call.1} parent=1 // pred_check_branch
      %35 = sbr.rel (0) target = $region13
    $region12: #{tpu_custom_call.1} parent=1 // pred_region
      %s37 = ssub.s32 2048, 2048
      %38 = vsyncadd [#allocation6], %s37
      %s39 = sshll.u32 [#allocation7], 4
      %s40 = int_to_ptr.vmem [resolvable:$true] %s39
      %45 = dma.hbm_to_vmem [thread:$0]  %s2, 2048, %s40, [#allocation6], 128, 128, 8
    $region13: #{tpu_custom_call.1} parent=1 // pred_fallthru
      _
    // Predicated region
    $region14: #{tpu_custom_call.1} parent=1 // pred_check
      _
    $region15: #{tpu_custom_call.1} parent=1 // pred_check_branch
      %47 = sbr.rel (0) target = $region17
    $region16: #{tpu_custom_call.1} parent=1 // pred_region
      _
    $region17: #{tpu_custom_call.1} parent=1 // pred_fallthru
      _
    // Predicated region
    $region18: #{tpu_custom_call.1} parent=1 // pred_check
      _
    $region19: #{tpu_custom_call.1} parent=1 // pred_check_branch
      %49 = sbr.rel (0) target = $region21
    $region20: #{tpu_custom_call.1} parent=1 // pred_region
      %50 = dma.done [#allocation3], 128
    $region21: #{tpu_custom_call.1} parent=1 // pred_fallthru
      _
    // Predicated region
    $region22: #{tpu_custom_call.1} parent=1 // pred_check
      _
    $region23: #{tpu_custom_call.1} parent=1 // pred_check_branch
      %52 = sbr.rel (0) target = $region25
    $region24: #{tpu_custom_call.1} parent=1 // pred_region
      %53 = dma.done [#allocation6], 512
    $region25: #{tpu_custom_call.1} parent=1 // pred_fallthru
      _
    // Predicated region
    $region26: #{tpu_custom_call.1} parent=1 // pred_check
      _
    $region27: #{tpu_custom_call.1} parent=1 // pred_check_branch
      %55 = sbr.rel (0) target = $region29
    $region28: #{tpu_custom_call.1} parent=1 // pred_region
      %56 = dma.done [#allocation6], 2048
    $region29: #{tpu_custom_call.1} parent=1 // pred_fallthru
      _
    %v57 = vld [vmem:[#allocation2] sm:$0xff]
    %v58 = vld [vmem:[#allocation5] sm:$0xff]
    %v59 = vld [vmem:[#allocation5 + $0x8] sm:$0xff]
    %v60 = vld [vmem:[#allocation5 + $0x10] sm:$0xff]
    %v61 = vld [vmem:[#allocation5 + $0x18] sm:$0xff]
    %vm62 = vcmask 261120
    %v64 = vsel %vm62, %v57, 0
    %66 = vmatprep.subr.mxu0 0.0
    %67 = vmatpush1.msra.mxu0 %v58
    %68 = vmatprep.subr.mxu0 0.0
    %69 = vmatpush1.msra.mxu0 %v59
    %70 = vmatprep.subr.mxu0 0.0
    %71 = vmatpush1.msra.mxu0 %v60
    %72 = vmatprep.subr.mxu0 0.0
    %73 = vmatpush1.msra.mxu0 %v61
    %74 = vmatprep.subr.mxu0 0.0
    %75 = vmatpush1.msra.mxu0 0.0
    %76 = vmatprep.subr.mxu0 0.0
    %77 = vmatpush1.msra.mxu0 0.0
    %78 = vmatprep.subr.mxu0 0.0
    %79 = vmatpush1.msra.mxu0 0.0
    %80 = vmatprep.subr.mxu0 0.0
    %81 = vmatpush1.msra.mxu0 0.0
    %82 = vmatprep.subr.mxu0 0.0
    %83 = vmatpush1.msra.mxu0 0.0
    %84 = vmatprep.subr.mxu0 0.0
    %85 = vmatpush1.msra.mxu0 0.0
    %86 = vmatprep.subr.mxu0 0.0
    %87 = vmatpush1.msra.mxu0 0.0
    %88 = vmatprep.subr.mxu0 0.0
    %89 = vmatpush1.msra.mxu0 0.0
    %90 = vmatprep.subr.mxu0 0.0
    %91 = vmatpush1.msra.mxu0 0.0
    %92 = vmatprep.subr.mxu0 0.0
    %93 = vmatpush1.msra.mxu0 0.0
    %94 = vmatprep.subr.mxu0 0.0
    %95 = vmatpush1.msra.mxu0 0.0
    %96 = vmatprep.subr.mxu0 0.0
    %97 = vmatpush1.msra.mxu0 0.0
    %98 = vmatprep.subr.mxu0 0.0
    %99 = vmatpush1.msra.mxu0 0.0
    %100 = vmatprep.subr.mxu0 0.0
    %101 = vmatpush1.msra.mxu0 0.0
    %102 = vmatprep.subr.mxu0 0.0
    %103 = vmatpush1.msra.mxu0 0.0
    %104 = vmatprep.subr.mxu0 0.0
    %105 = vmatpush1.msra.mxu0 0.0
    %106 = vmatprep.subr.mxu0 0.0
    %107 = vmatpush1.msra.mxu0 0.0
    %108 = vmatprep.subr.mxu0 0.0
    %109 = vmatpush1.msra.mxu0 0.0
    %110 = vmatprep.subr.mxu0 0.0
    %111 = vmatpush1.msra.mxu0 0.0
    %112 = vmatprep.subr.mxu0 0.0
    %113 = vmatpush1.msra.mxu0 0.0
    %114 = vmatprep.subr.mxu0 0.0
    %115 = vmatpush1.msra.mxu0 0.0
    %116 = vmatprep.subr.mxu0 0.0
    %117 = vmatpush1.msra.mxu0 0.0
    %118 = vmatprep.subr.mxu0 0.0
    %119 = vmatpush1.msra.mxu0 0.0
    %120 = vmatprep.subr.mxu0 0.0
    %121 = vmatpush1.msra.mxu0 0.0
    %122 = vmatprep.subr.mxu0 0.0
    %123 = vmatpush1.msra.mxu0 0.0
    %124 = vmatprep.subr.mxu0 0.0
    %125 = vmatpush1.msra.mxu0 0.0
    %126 = vmatprep.subr.mxu0 0.0
    %127 = vmatpush1.msra.mxu0 0.0
    %128 = vmatprep.subr.mxu0 0.0
    %129 = vmatpush1.msra.mxu0 0.0
    %130 = vmatprep.mubr.f32.mxu0 0.0
    %131 = vmatmul.mubr.f32.gmra.mrb[0].mxu0 %v64
    %v132 = vpop.f32.mrb[0].mxu0
    %v133 = vadd.f32 0.0, %v132
    %v134 = vpop.f32.mrb[0].mxu0
    %135 = vdwg.mxu0
    %v136 = vld [vmem:[%s3] sm:$0x1]
    %v138 = vlaneseq
    %v139 = vshrl.u32 %v138, 7
    %v140 = vsub.s32 0, %v139
    %v141 = vrot.slane %v136, %v140
    %v143 = vmul.f32 %v133, %v141
    %v144 = vld [vmem:[#allocation7] sm:$0xff]
    %v145 = vld [vmem:[#allocation7 + $0x8] sm:$0xff]
    %v146 = vld [vmem:[#allocation7 + $0x10] sm:$0xff]
    %v147 = vld [vmem:[#allocation7 + $0x18] sm:$0xff]
    %v148 = vld [vmem:[#allocation7 + $0x20] sm:$0xff]
    %v149 = vld [vmem:[#allocation7 + $0x28] sm:$0xff]
    %v150 = vld [vmem:[#allocation7 + $0x30] sm:$0xff]
    %v151 = vld [vmem:[#allocation7 + $0x38] sm:$0xff]
    %v152 = vld [vmem:[#allocation7 + $0x40] sm:$0xff]
    %v153 = vld [vmem:[#allocation7 + $0x48] sm:$0xff]
    %v154 = vld [vmem:[#allocation7 + $0x50] sm:$0xff]
    %v155 = vld [vmem:[#allocation7 + $0x58] sm:$0xff]
    %v156 = vld [vmem:[#allocation7 + $0x60] sm:$0xff]
    %v157 = vld [vmem:[#allocation7 + $0x68] sm:$0xff]
    %v158 = vld [vmem:[#allocation7 + $0x70] sm:$0xff]
    %v159 = vld [vmem:[#allocation7 + $0x78] sm:$0xff]
    %160 = vmatprep.subr.mxu0 0.0
    %161 = vmatpush1.msra.mxu0 %v144
    %162 = vmatprep.subr.mxu0 0.0
    %163 = vmatpush1.msra.mxu0 %v145
    %164 = vmatprep.subr.mxu0 0.0
    %165 = vmatpush1.msra.mxu0 %v146
    %166 = vmatprep.subr.mxu0 0.0
    %167 = vmatpush1.msra.mxu0 %v147
    %168 = vmatprep.subr.mxu0 0.0
    %169 = vmatpush1.msra.mxu0 %v148
    %170 = vmatprep.subr.mxu0 0.0
    %171 = vmatpush1.msra.mxu0 %v149
    %172 = vmatprep.subr.mxu0 0.0
    %173 = vmatpush1.msra.mxu0 %v150
    %174 = vmatprep.subr.mxu0 0.0
    %175 = vmatpush1.msra.mxu0 %v151
    %176 = vmatprep.subr.mxu0 0.0
    %177 = vmatpush1.msra.mxu0 %v152
    %178 = vmatprep.subr.mxu0 0.0
    %179 = vmatpush1.msra.mxu0 %v153
    %180 = vmatprep.subr.mxu0 0.0
    %181 = vmatpush1.msra.mxu0 %v154
    %182 = vmatprep.subr.mxu0 0.0
    %183 = vmatpush1.msra.mxu0 %v155
    %184 = vmatprep.subr.mxu0 0.0
    %185 = vmatpush1.msra.mxu0 %v156
    %186 = vmatprep.subr.mxu0 0.0
    %187 = vmatpush1.msra.mxu0 %v157
    %188 = vmatprep.subr.mxu0 0.0
    %189 = vmatpush1.msra.mxu0 %v158
    %190 = vmatprep.subr.mxu0 0.0
    %191 = vmatpush1.msra.mxu0 %v159
    %192 = vmatprep.subr.mxu0 0.0
    %193 = vmatpush1.msra.mxu0 0.0
    %194 = vmatprep.subr.mxu0 0.0
    %195 = vmatpush1.msra.mxu0 0.0
    %196 = vmatprep.subr.mxu0 0.0
    %197 = vmatpush1.msra.mxu0 0.0
    %198 = vmatprep.subr.mxu0 0.0
    %199 = vmatpush1.msra.mxu0 0.0
    %200 = vmatprep.subr.mxu0 0.0
    %201 = vmatpush1.msra.mxu0 0.0
    %202 = vmatprep.subr.mxu0 0.0
    %203 = vmatpush1.msra.mxu0 0.0
    %204 = vmatprep.subr.mxu0 0.0
    %205 = vmatpush1.msra.mxu0 0.0
    %206 = vmatprep.subr.mxu0 0.0
    %207 = vmatpush1.msra.mxu0 0.0
    %208 = vmatprep.subr.mxu0 0.0
    %209 = vmatpush1.msra.mxu0 0.0
    %210 = vmatprep.subr.mxu0 0.0
    %211 = vmatpush1.msra.mxu0 0.0
    %212 = vmatprep.subr.mxu0 0.0
    %213 = vmatpush1.msra.mxu0 0.0
    %214 = vmatprep.subr.mxu0 0.0
    %215 = vmatpush1.msra.mxu0 0.0
    %216 = vmatprep.subr.mxu0 0.0
    %217 = vmatpush1.msra.mxu0 0.0
    %218 = vmatprep.subr.mxu0 0.0
    %219 = vmatpush1.msra.mxu0 0.0
    %220 = vmatprep.subr.mxu0 0.0
    %221 = vmatpush1.msra.mxu0 0.0
    %222 = vmatprep.subr.mxu0 0.0
    %223 = vmatpush1.msra.mxu0 0.0
    %224 = vmatprep.mubr.f32.mxu0 0.0
    %225 = vmatmul.mubr.f32.gmra.mrb[0].mxu0 %v143
    %v226 = vpop.f32.mrb[0].mxu0
    %v227 = vadd.f32 0.0, %v226
    %v228 = vpop.f32.mrb[0].mxu0
    %229 = vdwg.mxu0
    %230 = vst [vmem:[#allocation8] sm:$0xff] %v227
    // Predicated region
    $region30: #{tpu_custom_call.1} parent=1 // pred_check
      _
    $region31: #{tpu_custom_call.1} parent=1 // pred_check_branch
      %232 = sbr.rel (0) target = $region33
    $region32: #{tpu_custom_call.1} parent=1 // pred_region
      %s234 = ssub.s32 128, 128
      %235 = vsyncadd [#allocation4], %s234
      %s237 = sshll.u32 [#allocation8], 4
      %s238 = int_to_ptr.vmem [resolvable:$true] %s237
      %240 = dma.vmem_to_hbm [thread:$0]  %s238, 128, %s4, [#allocation4]
    $region33: #{tpu_custom_call.1} parent=1 // pred_fallthru
      _
    // Predicated region
    $region34: #{tpu_custom_call.1} parent=1 // pred_check
      _
    $region35: #{tpu_custom_call.1} parent=1 // pred_check_branch
      %242 = sbr.rel (0) target = $region37
    $region36: #{tpu_custom_call.1} parent=1 // pred_region
      %243 = dma.done [#allocation4], 128
    $region37: #{tpu_custom_call.1} parent=1 // pred_fallthru
      _
    %244 = vsyncpa [#allocation3], 1
    %245 = vsyncpa [#allocation6], 1
    %246 = vsyncpa [#allocation4], 1

</llo_original>
